<compile_context>
chip_gen: v5e
topology: v5e:2x2
jax: 0.10.0
libtpu: 0.0.40
codegen_flags: <defaults>
</compile_context>

<pallas_src>
import functools

import jax
import jax.numpy as jnp
from jax.experimental import pallas as pl
from jax.experimental.pallas import tpu as pltpu


def _oim_loss_kernel(x_ref, lut_ref, bias_ref, logits_ref, lse_ref,
                     m_sc, l_sc, *, apply_bias):
    k = pl.program_id(1)
    nk = pl.num_programs(1)

    @pl.when(k == 0)
    def _init():
        m_sc[...] = jnp.full(m_sc.shape, -1e30, jnp.float32)
        l_sc[...] = jnp.zeros(l_sc.shape, jnp.float32)

    # x_ref is already scaled by `scalar` and cast to the matmul dtype in the
    # wrapper (once per call).  Contract BOTH operands on the feature axis so
    # the LUT is consumed in its native (C, F) layout -> no transpose/relayout.
    s = jax.lax.dot_general(
        x_ref[...], lut_ref[...],
        dimension_numbers=(((1,), (1,)), ((), ())),
        preferred_element_type=jnp.float32)               # (BT, TC) f32

    # Lane-dense logits tile writeback.
    logits_ref[...] = s.astype(logits_ref.dtype)

    # Padded class columns are excluded from the logsumexp by adding a
    # precomputed 0 / -1e30 bias row (compiled in only when C % 128 != 0).
    if apply_bias:
        s_lse = s + bias_ref[...]
    else:
        s_lse = s

    # Online (flash-style) logsumexp across class tiles.
    m_prev = m_sc[...]
    m_new = jnp.maximum(m_prev, jnp.max(s_lse, axis=-1, keepdims=True))
    alpha = jnp.exp(m_prev - m_new)
    l_sc[...] = alpha * l_sc[...] + jnp.sum(jnp.exp(s_lse - m_new),
                                            axis=-1, keepdims=True)
    m_sc[...] = m_new

    @pl.when(k == nk - 1)
    def _fin():
        lse_ref[...] = (m_sc[...] + jnp.log(l_sc[...])).astype(lse_ref.dtype)


def _round_up(n, m):
    return (n + m - 1) // m * m


@functools.lru_cache(maxsize=1)
def _vmem_budget_bytes():
    """Generation-aware scoped-VMEM budget (bytes)."""
    try:
        cap = int(pltpu.get_tpu_info().vmem_capacity_bytes)
    except Exception:
        cap = 64 << 20                    # conservative: v7x physical per-core VMEM
    budget = (cap * 5) // 8               # ~80 MiB on 128 MiB parts, ~40 MiB on v7x
    return int(min(max(budget, 16 << 20), 100 << 20))


def _vmem_estimate(bt, tc, f_pad, lut_bytes, logits_bytes, lut_nbuf):
    return (2 * bt * f_pad * lut_bytes            # resident x tile (double-buffered)
            + lut_nbuf * tc * f_pad * lut_bytes   # streamed LUT buffers
            + 2 * bt * tc * logits_bytes          # logits writeback tile
            + 2 * tc * 4                          # class-mask bias row
            + 2 * bt * 4 * 3                      # lse out + m/l scratch
            + (2 << 20))                          # Mosaic internal scratch margin


def prepare_lut(lut, matmul_dtype=jnp.bfloat16):
    """Pad the (C, F) LUT to lane-dense (C_pad, F_pad) and cast once.

    Keep the result persistent across steps in a training loop; re-materializing
    it per call costs a full extra HBM read+write of the LUT.
    """
    C, F = lut.shape
    C_pad = _round_up(C, 128)
    F_pad = _round_up(F, 128)
    return jnp.zeros((C_pad, F_pad), matmul_dtype).at[:C, :F].set(
        lut.astype(matmul_dtype))


def oim_loss(inputs, targets, lut, *, scalar=1.0, num_classes=None,
             matmul_dtype=jnp.bfloat16, logits_dtype=jnp.float32,
             lut_is_prepared=False):
    """Forward pass of OIMLoss.

    inputs:  (B, F) float activations
    targets: (B,)   int class ids
    lut:     raw (C, F) buffer, or (lut_is_prepared=True) output of prepare_lut()
    returns: (loss: scalar f32, logits: (B, C) logits_dtype) where
             logits = scalar * inputs @ lut.T and loss = mean CE (size_average=True).
    """
    B, F = inputs.shape
    if lut_is_prepared:
        assert num_classes is not None, "num_classes required for a prepared LUT"
        C = int(num_classes)
        C_pad, F_pad = lut.shape
        assert F <= F_pad and C <= C_pad and lut.dtype == jnp.dtype(matmul_dtype)
        lut_p = lut
    else:
        C, F2 = lut.shape
        assert F == F2
        C_pad = _round_up(C, 128)
        F_pad = _round_up(F, 128)
        # NOTE: padding/casting the LUT here costs an extra HBM round trip per
        # call — prefer calling prepare_lut() once outside the training step.
        lut_p = prepare_lut(lut, matmul_dtype)

    B_pad = _round_up(B, 8)
    lut_bytes = jnp.dtype(matmul_dtype).itemsize
    logits_bytes = jnp.dtype(logits_dtype).itemsize
    budget = _vmem_budget_bytes()

    def fits(bt, tc, nbuf=2):
        return _vmem_estimate(bt, tc, F_pad, lut_bytes, logits_bytes, nbuf) <= budget

    # Tile selection: maximize BT first (each extra batch tile re-streams the
    # whole LUT from HBM), then maximize TC (fewer grid steps, wider stores).
    BT = 8
    for cand in (B_pad, 2048, 1024, 512, 256, 128, 64, 32, 16, 8):
        if cand <= B_pad and B_pad % cand == 0 and fits(cand, 128):
            BT = cand
            break

    TC = 128
    for cand in (2048, 1024, 512, 256, 128):
        if C_pad % cand == 0 and fits(BT, cand):
            TC = cand
            break

    nk = C_pad // TC
    lut_nbuf = 3 if (nk >= 3 and fits(BT, TC, 3)) else 2

    # Scale + cast the activations once, fused into the pad (tiny vs. the LUT).
    # TODO(synk): PyTorch scales the f32 logits after the matmul; scaling the
    # activations before the bf16 cast only changes low-order operand bits.
    x_p = jnp.zeros((B_pad, F_pad), matmul_dtype).at[:B, :F].set(
        (inputs.astype(jnp.float32) * jnp.float32(scalar)).astype(matmul_dtype))

    apply_bias = (C != C_pad)
    bias = jnp.zeros((1, C_pad), jnp.float32)
    if apply_bias:
        bias = bias.at[0, C:].set(-1e30)

    grid = (B_pad // BT, C_pad // TC)
    kernel = functools.partial(_oim_loss_kernel, apply_bias=apply_bias)

    lut_spec_kwargs = {}
    if lut_nbuf == 3:
        lut_spec_kwargs["pipeline_mode"] = pl.Buffered(3)

    # TODO(synk): on v7x megacore, when B_pad // BT >= 2 the parallel batch
    # split re-streams the LUT once per core; a class-axis split with per-core
    # partial (m, l) state plus a small combine pass would keep LUT traffic 1x.
    # TODO(synk): optional fp8 LUT operand (per-row scale) for v7x is not wired.
    logits_pad, lse = pl.pallas_call(
        kernel,
        out_shape=(
            jax.ShapeDtypeStruct((B_pad, C_pad), logits_dtype),
            jax.ShapeDtypeStruct((B_pad, 1), jnp.float32),
        ),
        grid_spec=pltpu.PrefetchScalarGridSpec(
            num_scalar_prefetch=0,
            grid=grid,
            in_specs=[
                pl.BlockSpec((BT, F_pad), lambda i, k: (i, 0)),     # x (resident)
                pl.BlockSpec((TC, F_pad), lambda i, k: (k, 0),      # lut (streamed)
                             **lut_spec_kwargs),
                pl.BlockSpec((1, TC), lambda i, k: (0, k)),         # class-mask bias
            ],
            out_specs=[
                pl.BlockSpec((BT, TC), lambda i, k: (i, k)),        # logits tile
                pl.BlockSpec((BT, 1), lambda i, k: (i, 0)),         # per-sample lse
            ],
            scratch_shapes=[
                pltpu.VMEM((BT, 1), jnp.float32),                   # running max
                pltpu.VMEM((BT, 1), jnp.float32),                   # running sum
            ],
        ),
        compiler_params=pltpu.CompilerParams(
            dimension_semantics=("parallel", "arbitrary"),
            vmem_limit_bytes=int(budget)),
    )(x_p, lut_p, bias)

    logits = logits_pad[:B, :C]
    tgt = targets.astype(jnp.int32)[:, None]
    tgt_logit = jnp.take_along_axis(logits.astype(jnp.float32), tgt, axis=-1)[:, 0]
    # size_average=True => mean over the batch.
    loss = jnp.mean(lse[:B, 0] - tgt_logit)
    # TODO(synk): F.cross_entropy `weight=` option (module default is None) and
    # the backward-time LUT momentum update / row renorm are not implemented.
    return loss, logits


def _reference(inputs, targets, lut, scalar=1.0, matmul_dtype=jnp.float32):
    xs = (inputs.astype(jnp.float32) * jnp.float32(scalar)).astype(matmul_dtype)
    logits = jax.lax.dot_general(
        xs, lut.astype(matmul_dtype),
        dimension_numbers=(((1,), (1,)), ((), ())),
        preferred_element_type=jnp.float32)
    logz = jax.scipy.special.logsumexp(logits, axis=-1)
    tgt_logit = jnp.take_along_axis(
        logits, targets[:, None].astype(jnp.int32), axis=-1)[:, 0]
    return jnp.mean(logz - tgt_logit), logits


if __name__ == "__main__":
    # Small shapes consistent with the module: num_features=32, num_classes=16, batch=8.
    num_features = 32
    num_classes = 16
    batch = 8
    scalar = 0.5

    key = jax.random.PRNGKey(0)
    k_x, k_lut, k_t = jax.random.split(key, 3)

    x = jax.random.normal(k_x, (batch, num_features), dtype=jnp.float32)
    # The module registers lut as zeros; use unit-norm random rows here so the
    # kernel computes something non-degenerate.
    lut = jax.random.normal(k_lut, (num_classes, num_features), dtype=jnp.float32)
    lut = lut / jnp.linalg.norm(lut, axis=-1, keepdims=True)
    targets = jax.random.randint(k_t, (batch,), 0, num_classes, dtype=jnp.int32)

    # Pad/cast the LUT once (persistent buffer), then run the kernel.
    lut_prep = prepare_lut(lut)
    loss, logits = oim_loss(x, targets, lut_prep, scalar=scalar,
                            num_classes=num_classes, lut_is_prepared=True)
    jax.block_until_ready((loss, logits))

    # Tight check against a reference using the same bf16 operand casting.
    ref_loss_bf, ref_logits_bf = _reference(
        x, targets, lut, scalar=scalar, matmul_dtype=jnp.bfloat16)
    assert jnp.allclose(logits, ref_logits_bf, atol=1e-4, rtol=1e-4)
    assert jnp.allclose(loss, ref_loss_bf, atol=1e-4, rtol=1e-4)

    # Semantics check against the full-f32 reference (looser tol for bf16 matmul).
    ref_loss_f32, ref_logits_f32 = _reference(
        x, targets, lut, scalar=scalar, matmul_dtype=jnp.float32)
    assert jnp.allclose(logits, ref_logits_f32, atol=0.05, rtol=0.05)
    assert jnp.allclose(loss, ref_loss_f32, atol=0.05, rtol=0.05)

    print("KERNEL_OK")
</pallas_src>

<mosaic_0001>
module attributes {stable_mosaic.version = 11 : i64} {
  func.func @_oim_loss_kernel(%arg0: i32, %arg1: i32, %arg2: memref<8x128xbf16, #tpu.memory_space<vmem>>, %arg3: memref<128x128xbf16, #tpu.memory_space<vmem>>, %arg4: memref<1x128xf32, #tpu.memory_space<vmem>>, %arg5: memref<8x128xf32, #tpu.memory_space<vmem>>, %arg6: memref<8x1xf32, #tpu.memory_space<vmem>>, %arg7: memref<8x1xf32, #tpu.memory_space<vmem>>, %arg8: memref<8x1xf32, #tpu.memory_space<vmem>>) attributes {dimension_semantics = [#tpu.dimension_semantics<parallel>, #tpu.dimension_semantics<arbitrary>], iteration_bounds = array<i64: 1, 1>, scalar_prefetch = 0 : i64, scratch_operands = 2 : i64, tpu.core_type = #tpu.core_type<tc>, window_params = [{transform_indices = @transform_0, window_bounds = array<i64: 8, 128>}, {transform_indices = @transform_1, window_bounds = array<i64: 128, 128>}, {transform_indices = @transform_2, window_bounds = array<i64: 1, 128>}, {transform_indices = @transform_3, window_bounds = array<i64: 8, 128>}, {transform_indices = @transform_4, window_bounds = array<i64: 8, 1>}]} {
    %c0_i32 = arith.constant 0 : i32
    %0 = arith.cmpi eq, %arg1, %c0_i32 : i32
    %1 = arith.extui %0 : i1 to i32
    %c0_i32_0 = arith.constant 0 : i32
    %2 = arith.cmpi ne, %1, %c0_i32_0 : i32
    scf.if %2 {
      %cst_20 = arith.constant -1.000000e+30 : f32
      %29 = vector.broadcast %cst_20 : f32 to vector<8x1xf32>
      %c0_21 = arith.constant 0 : index
      %c0_22 = arith.constant 0 : index
      %30 = vector.load %arg7[%c0_21, %c0_22] : memref<8x1xf32, #tpu.memory_space<vmem>>, vector<8x1xf32>
      tpu.vector_store %arg7[%c0_21, %c0_22], %29 {strides = array<i32>} : memref<8x1xf32, #tpu.memory_space<vmem>>, vector<8x1xf32>,
      %cst_23 = arith.constant 0.000000e+00 : f32
      %31 = vector.broadcast %cst_23 : f32 to vector<8x1xf32>
      %c0_24 = arith.constant 0 : index
      %c0_25 = arith.constant 0 : index
      %32 = vector.load %arg8[%c0_24, %c0_25] : memref<8x1xf32, #tpu.memory_space<vmem>>, vector<8x1xf32>
      tpu.vector_store %arg8[%c0_24, %c0_25], %31 {strides = array<i32>} : memref<8x1xf32, #tpu.memory_space<vmem>>, vector<8x1xf32>,
    } else {
    }
    %c0 = arith.constant 0 : index
    %c0_1 = arith.constant 0 : index
    %3 = vector.load %arg2[%c0, %c0_1] : memref<8x128xbf16, #tpu.memory_space<vmem>>, vector<8x128xbf16>
    %c0_2 = arith.constant 0 : index
    %c0_3 = arith.constant 0 : index
    %4 = vector.load %arg3[%c0_2, %c0_3] : memref<128x128xbf16, #tpu.memory_space<vmem>>, vector<128x128xbf16>
    %cst = arith.constant dense<0.000000e+00> : vector<8x128xf32>
    %5 = tpu.matmul %3, %4, %cst {dimension_numbers = #tpu.dot_dimension_numbers<[1], [1], [0], [0], [0, 0, 1, 0], [], []>} : vector<8x128xbf16>, vector<128x128xbf16>, vector<8x128xf32> -> vector<8x128xf32>
    %c0_4 = arith.constant 0 : index
    %c0_5 = arith.constant 0 : index
    %6 = vector.load %arg5[%c0_4, %c0_5] : memref<8x128xf32, #tpu.memory_space<vmem>>, vector<8x128xf32>
    tpu.vector_store %arg5[%c0_4, %c0_5], %5 {strides = array<i32>} : memref<8x128xf32, #tpu.memory_space<vmem>>, vector<8x128xf32>,
    %c0_6 = arith.constant 0 : index
    %c0_7 = arith.constant 0 : index
    %7 = vector.load %arg4[%c0_6, %c0_7] : memref<1x128xf32, #tpu.memory_space<vmem>>, vector<1x128xf32>
    %8 = vector.broadcast %7 : vector<1x128xf32> to vector<8x128xf32>
    %9 = arith.addf %5, %8 : vector<8x128xf32>
    %c0_8 = arith.constant 0 : index
    %c0_9 = arith.constant 0 : index
    %10 = vector.load %arg7[%c0_8, %c0_9] : memref<8x1xf32, #tpu.memory_space<vmem>>, vector<8x1xf32>
    %cst_10 = arith.constant dense<0xFF800000> : vector<8xf32>
    %11 = vector.multi_reduction <maximumf>, %9, %cst_10 [1] : vector<8x128xf32> to vector<8xf32>
    %12 = vector.shape_cast %11 : vector<8xf32> to vector<8x1xf32>
    %13 = arith.maximumf %10, %12 : vector<8x1xf32>
    %14 = arith.subf %10, %13 : vector<8x1xf32>
    %15 = math.exp %14 : vector<8x1xf32>
    %c0_11 = arith.constant 0 : index
    %c0_12 = arith.constant 0 : index
    %16 = vector.load %arg8[%c0_11, %c0_12] : memref<8x1xf32, #tpu.memory_space<vmem>>, vector<8x1xf32>
    %17 = arith.mulf %15, %16 : vector<8x1xf32>
    %18 = vector.broadcast %13 : vector<8x1xf32> to vector<8x128xf32>
    %19 = arith.subf %9, %18 : vector<8x128xf32>
    %20 = math.exp %19 : vector<8x128xf32>
    %cst_13 = arith.constant dense<0.000000e+00> : vector<8xf32>
    %21 = vector.multi_reduction <add>, %20, %cst_13 [1] : vector<8x128xf32> to vector<8xf32>
    %22 = vector.shape_cast %21 : vector<8xf32> to vector<8x1xf32>
    %23 = arith.addf %17, %22 : vector<8x1xf32>
    %c0_14 = arith.constant 0 : index
    %c0_15 = arith.constant 0 : index
    %24 = vector.load %arg8[%c0_14, %c0_15] : memref<8x1xf32, #tpu.memory_space<vmem>>, vector<8x1xf32>
    tpu.vector_store %arg8[%c0_14, %c0_15], %23 {strides = array<i32>} : memref<8x1xf32, #tpu.memory_space<vmem>>, vector<8x1xf32>,
    %c0_16 = arith.constant 0 : index
    %c0_17 = arith.constant 0 : index
    %25 = vector.load %arg7[%c0_16, %c0_17] : memref<8x1xf32, #tpu.memory_space<vmem>>, vector<8x1xf32>
    tpu.vector_store %arg7[%c0_16, %c0_17], %13 {strides = array<i32>} : memref<8x1xf32, #tpu.memory_space<vmem>>, vector<8x1xf32>,
    %c0_i32_18 = arith.constant 0 : i32
    %26 = arith.cmpi eq, %arg1, %c0_i32_18 : i32
    %27 = arith.extui %26 : i1 to i32
    %c0_i32_19 = arith.constant 0 : i32
    %28 = arith.cmpi ne, %27, %c0_i32_19 : i32
    scf.if %28 {
      %c0_20 = arith.constant 0 : index
      %c0_21 = arith.constant 0 : index
      %29 = vector.load %arg7[%c0_20, %c0_21] : memref<8x1xf32, #tpu.memory_space<vmem>>, vector<8x1xf32>
      %c0_22 = arith.constant 0 : index
      %c0_23 = arith.constant 0 : index
      %30 = vector.load %arg8[%c0_22, %c0_23] : memref<8x1xf32, #tpu.memory_space<vmem>>, vector<8x1xf32>
      %31 = math.log %30 : vector<8x1xf32>
      %32 = arith.addf %29, %31 : vector<8x1xf32>
      %c0_24 = arith.constant 0 : index
      %c0_25 = arith.constant 0 : index
      %33 = vector.load %arg6[%c0_24, %c0_25] : memref<8x1xf32, #tpu.memory_space<vmem>>, vector<8x1xf32>
      tpu.vector_store %arg6[%c0_24, %c0_25], %32 {strides = array<i32>} : memref<8x1xf32, #tpu.memory_space<vmem>>, vector<8x1xf32>,
    } else {
    }
    return
  }
  func.func @transform_0(%arg0: i32, %arg1: i32) -> (i32, i32) {
    %c0_i32 = arith.constant 0 : i32
    %c0_i32_0 = arith.constant 0 : i32
    return %arg0, %c0_i32 : i32, i32
  }
  func.func @transform_1(%arg0: i32, %arg1: i32) -> (i32, i32) {
    %c0_i32 = arith.constant 0 : i32
    %c0_i32_0 = arith.constant 0 : i32
    return %arg1, %c0_i32 : i32, i32
  }
  func.func @transform_2(%arg0: i32, %arg1: i32) -> (i32, i32) {
    %c0_i32 = arith.constant 0 : i32
    %c0_i32_0 = arith.constant 0 : i32
    return %c0_i32, %arg1 : i32, i32
  }
  func.func @transform_3(%arg0: i32, %arg1: i32) -> (i32, i32) {
    %c0_i32 = arith.constant 0 : i32
    return %arg0, %arg1 : i32, i32
  }
  func.func @transform_4(%arg0: i32, %arg1: i32) -> (i32, i32) {
    %c0_i32 = arith.constant 0 : i32
    %c0_i32_0 = arith.constant 0 : i32
    return %arg0, %c0_i32 : i32, i32
  }
}

</mosaic_0001>

<llo_original>
// kernel: tpu_custom_call.1
$region0: #{tpu_custom_call.1}
  #allocation0 [shape = 'u32[]', space=smem, size = 0x4, offset = 0x4, fixed_abs, tag = 'smem constant byte address 0x4 - core index']
  #allocation1 [shape = 'u32[72,128]{1,0:T(1,128)}', space=vmem, size = 0x9000, scoped, tag = 'internal scratch']
  #allocation2 [shape = 'f32[8,1]{1,0:T(8,128)}', space=vmem, size = 0x1000, scoped, tag = 'scratch operand']
  #allocation3 [shape = 'f32[8,1]{1,0:T(8,128)}', space=vmem, size = 0x1000, scoped, tag = 'scratch operand']
  %s0 = inlined_call_operand.hbm [shape: bf16[8,128], index: 0, kind: input, shape index: {}]
  %s1 = inlined_call_operand.hbm [shape: bf16[128,128], index: 1, kind: input, shape index: {}]
  %s2 = inlined_call_operand.vmem [shape: f32[1,128], index: 2, kind: input, shape index: {}]
  %s3 = inlined_call_operand.hbm [shape: f32[8,128], index: 3, kind: output, shape index: {0}]
  %s4 = inlined_call_operand.vmem [shape: f32[8,1], index: 4, kind: output, shape index: {1}]
  %5 = xla_tuple %s3, %s4
  %s6 = sld [smem:[#allocation0]]
  $region46: #{tpu_custom_call.1} parent=0
    _
  %s8 = ssub.s32 1, %s6
  %s9 = scalar_select 0, %s8, %s6
  $region1: #{tpu_custom_call.1} parent=0
    #allocation4 [shape = 'u8[2048]{0}', space=vmem, size = 0x800, scoped, tag = 'input window, operand 0, single buffered']
    #allocation5 [shape = 's32[1]{0}', space=sflag, size = 0x4, scoped, tag = 'scoped memory for tpu_custom_call.1']
    #allocation6 [shape = 's32[1]{0}', space=sflag, size = 0x4, scoped, tag = 'scoped memory for tpu_custom_call.1']
    #allocation7 [shape = 'u8[32768]{0}', space=vmem, size = 0x8000, scoped, tag = 'input window, operand 1, single buffered']
    #allocation8 [shape = 's32[1]{0}', space=sflag, size = 0x4, scoped, tag = 'scoped memory for tpu_custom_call.1']
    #allocation9 [shape = 'u8[4096]{0}', space=vmem, size = 0x1000, scoped, tag = 'output window, operand 0, single buffered']
    %10 = vsyncpa [#allocation5], 0
    %11 = vsyncpa [#allocation8], 0
    %12 = vsyncpa [#allocation6], 0
    // Predicated region
    $region2: #{tpu_custom_call.1} parent=1 // pred_check
      _
    $region3: #{tpu_custom_call.1} parent=1 // pred_check_branch
      %14 = sbr.rel (0) target = $region5
    $region4: #{tpu_custom_call.1} parent=1 // pred_region
      %16 = vsyncadd [#allocation5], 0
      %s18 = sshll.u32 %s0, 4
      %s19 = int_to_ptr.hbm [resolvable:$true] %s18
      %s20 = sshll.u32 [#allocation4], 4
      %s21 = int_to_ptr.vmem [resolvable:$true] %s20
      %23 = dma.hbm_to_vmem [thread:$0]  %s19, 64, %s21, [#allocation5]
    $region5: #{tpu_custom_call.1} parent=1 // pred_fallthru
      _
    // Predicated region
    $region6: #{tpu_custom_call.1} parent=1 // pred_check
      _
    $region7: #{tpu_custom_call.1} parent=1 // pred_check_branch
      %25 = sbr.rel (0) target = $region9
    $region8: #{tpu_custom_call.1} parent=1 // pred_region
      %27 = vsyncadd [#allocation8], 0
      %s28 = sshll.u32 %s1, 4
      %s29 = int_to_ptr.hbm [resolvable:$true] %s28
      %s30 = sshll.u32 [#allocation7], 4
      %s31 = int_to_ptr.vmem [resolvable:$true] %s30
      %36 = dma.hbm_to_vmem [thread:$0]  %s29, 1024, %s31, [#allocation8], 64, 64, 4
    $region9: #{tpu_custom_call.1} parent=1 // pred_fallthru
      _
    // Predicated region
    $region10: #{tpu_custom_call.1} parent=1 // pred_check
      _
    $region11: #{tpu_custom_call.1} parent=1 // pred_check_branch
      %38 = sbr.rel (0) target = $region13
    $region12: #{tpu_custom_call.1} parent=1 // pred_region
      _
    $region13: #{tpu_custom_call.1} parent=1 // pred_fallthru
      _
    // Predicated region
    $region14: #{tpu_custom_call.1} parent=1 // pred_check
      _
    $region15: #{tpu_custom_call.1} parent=1 // pred_check_branch
      %40 = sbr.rel (0) target = $region17
    $region16: #{tpu_custom_call.1} parent=1 // pred_region
      %42 = dma.done [#allocation5], 64
    $region17: #{tpu_custom_call.1} parent=1 // pred_fallthru
      _
    // Predicated region
    $region18: #{tpu_custom_call.1} parent=1 // pred_check
      _
    $region19: #{tpu_custom_call.1} parent=1 // pred_check_branch
      %44 = sbr.rel (0) target = $region21
    $region20: #{tpu_custom_call.1} parent=1 // pred_region
      %46 = dma.done [#allocation8], 1024
    $region21: #{tpu_custom_call.1} parent=1 // pred_fallthru
      _
    %p47 = scmp.eq.s32.totalorder 0, 0
    // Predicated region
    $region22: #{tpu_custom_call.1} parent=1 // pred_check
      %p48 = pneg %p47
    $region23: #{tpu_custom_call.1} parent=1 // pred_check_branch
      %50 = sbr.rel (%p48) target = $region25
    $region24: #{tpu_custom_call.1} parent=1 // pred_region
      %vm51 = vcmask 7168
      %52 = vst.msk [vmem:[#allocation2] sm:$0xff] %vm51, -1e+30
      %53 = vst.msk [vmem:[#allocation3] sm:$0xff] %vm51, 0.0
    $region25: #{tpu_custom_call.1} parent=1 // pred_fallthru
      _
    %v54 = vld [vmem:[#allocation4] sm:$0xf]
    %v55 = vld [vmem:[#allocation7] sm:$0xf]
    %v56 = vld [vmem:[#allocation7 + $0x4] sm:$0xf]
    %v57 = vld [vmem:[#allocation7 + $0x8] sm:$0xf]
    %v58 = vld [vmem:[#allocation7 + $0xc] sm:$0xf]
    %v59 = vld [vmem:[#allocation7 + $0x10] sm:$0xf]
    %v60 = vld [vmem:[#allocation7 + $0x14] sm:$0xf]
    %v61 = vld [vmem:[#allocation7 + $0x18] sm:$0xf]
    %v62 = vld [vmem:[#allocation7 + $0x1c] sm:$0xf]
    %v63 = vld [vmem:[#allocation7 + $0x20] sm:$0xf]
    %v64 = vld [vmem:[#allocation7 + $0x24] sm:$0xf]
    %v65 = vld [vmem:[#allocation7 + $0x28] sm:$0xf]
    %v66 = vld [vmem:[#allocation7 + $0x2c] sm:$0xf]
    %v67 = vld [vmem:[#allocation7 + $0x30] sm:$0xf]
    %v68 = vld [vmem:[#allocation7 + $0x34] sm:$0xf]
    %v69 = vld [vmem:[#allocation7 + $0x38] sm:$0xf]
    %v70 = vld [vmem:[#allocation7 + $0x3c] sm:$0xf]
    %v87 = vunpack.c.l.b16 %v55
    %v88 = vunpack.c.l.b16 %v56
    %v89 = vunpack.c.l.b16 %v57
    %v90 = vunpack.c.l.b16 %v58
    %v91 = vunpack.c.l.b16 %v59
    %v92 = vunpack.c.l.b16 %v60
    %v93 = vunpack.c.l.b16 %v61
    %v94 = vunpack.c.l.b16 %v62
    %v95 = vunpack.c.l.b16 %v63
    %v96 = vunpack.c.l.b16 %v64
    %v97 = vunpack.c.l.b16 %v65
    %v98 = vunpack.c.l.b16 %v66
    %v99 = vunpack.c.l.b16 %v67
    %v100 = vunpack.c.l.b16 %v68
    %v101 = vunpack.c.l.b16 %v69
    %v102 = vunpack.c.l.b16 %v70
    %v103 = vpack.c.b16 %v88, %v87
    %v104 = vpack.c.b16 %v90, %v89
    %v105 = vpack.c.b16 %v92, %v91
    %v106 = vpack.c.b16 %v94, %v93
    %v107 = vpack.c.b16 %v96, %v95
    %v108 = vpack.c.b16 %v98, %v97
    %v109 = vpack.c.b16 %v100, %v99
    %v110 = vpack.c.b16 %v102, %v101
    %119 = vmatpush.bf16.xpose.msra.mxu0 %v110
    %120 = vmatpush.bf16.xpose.msra.mxu0 %v109
    %121 = vmatpush.bf16.xpose.msra.mxu0 %v108
    %122 = vmatpush.bf16.xpose.msra.mxu0 %v107
    %123 = vmatpush.bf16.xpose.msra.mxu0 %v106
    %124 = vmatpush.bf16.xpose.msra.mxu0 %v105
    %125 = vmatpush.bf16.xpose.msra.mxu0 %v104
    %126 = vmatpush.bf16.xpose.msra.mxu0 %v103
    %127 = vmatmul.bf16.gmra.mxu0 %v54
    %v128 = vpop.f32.mrf.mxu0
    %v129 = vadd.f32 0.0, %v128
    %v130 = vpop.f32.mrf.mxu0
    %131 = vdwg.mxu0
    %132 = vst [vmem:[#allocation9] sm:$0xff] %v129
    %v133 = vld [vmem:[%s2] sm:$0x1]
    %v135 = vperm.slane %v133, 0
    %v137 = vadd.f32 %v129, %v135
    %v138 = vld [vmem:[#allocation2] sm:$0xff]
    %139 = vmax.xlane.f32.xlu0 %v137
    %v140 = vpop.xlane.xlu0 %139
    %v141 = vmax.f32 %v138, %v140
    %v142 = vsub.f32 %v138, %v141
    %v143 = vmul.f32 %v142, 1.442695
    %v144 = vpow.pop %v143
    %v145 = vld [vmem:[#allocation3] sm:$0xff]
    %v146 = vmul.f32 %v144, %v145
    %148 = vset.pattern.permute.xlu0 0
    %149 = vperm.xlu0 %148, %v141
    %v150 = vpop.permute.xlu0 %149
    %v152 = vsub.f32 %v137, %v150
    %v153 = vmul.f32 %v152, 1.442695
    %v154 = vpow.pop %v153
    %155 = vadd.xlane.f32.xlu0 %v154
    %v156 = vpop.xlane.xlu0 %155
    %v157 = vadd.f32 %v146, %v156
    %vm158 = vcmask 7168
    %159 = vst.msk [vmem:[#allocation3] sm:$0xff] %vm158, %v157
    %160 = vst.msk [vmem:[#allocation2] sm:$0xff] %vm158, %v141
    // Predicated region
    $region26: #{tpu_custom_call.1} parent=1 // pred_check
      %p161 = pneg %p47
    $region27: #{tpu_custom_call.1} parent=1 // pred_check_branch
      %163 = sbr.rel (%p161) target = $region29
    $region28: #{tpu_custom_call.1} parent=1 // pred_region
      %v164 = vld [vmem:[#allocation2] sm:$0xff]
      %v165 = vld [vmem:[#allocation3] sm:$0xff]
      %v166 = vlog2.pop %v165
      %v167 = vmul.f32 %v166, 0.6931472
      %v168 = vadd.f32 %v164, %v167
      %169 = vst.msk [vmem:[%s4] sm:$0xff] %vm158, %v168
    $region29: #{tpu_custom_call.1} parent=1 // pred_fallthru
      _
    // Predicated region
    $region30: #{tpu_custom_call.1} parent=1 // pred_check
      _
    $region31: #{tpu_custom_call.1} parent=1 // pred_check_branch
      %171 = sbr.rel (0) target = $region33
    $region32: #{tpu_custom_call.1} parent=1 // pred_region
      %173 = vsyncadd [#allocation6], 0
      %s175 = sshll.u32 [#allocation9], 4
      %s176 = int_to_ptr.vmem [resolvable:$true] %s175
      %s177 = sshll.u32 %s3, 4
      %s178 = int_to_ptr.hbm [resolvable:$true] %s177
      %180 = dma.vmem_to_hbm [thread:$0]  %s176, 128, %s178, [#allocation6]
    $region33: #{tpu_custom_call.1} parent=1 // pred_fallthru
      _
    // Predicated region
    $region34: #{tpu_custom_call.1} parent=1 // pred_check
      _
    $region35: #{tpu_custom_call.1} parent=1 // pred_check_branch
      %182 = sbr.rel (0) target = $region37
    $region36: #{tpu_custom_call.1} parent=1 // pred_region
      _
    $region37: #{tpu_custom_call.1} parent=1 // pred_fallthru
      _
    // Predicated region
    $region38: #{tpu_custom_call.1} parent=1 // pred_check
      _
    $region39: #{tpu_custom_call.1} parent=1 // pred_check_branch
      %184 = sbr.rel (0) target = $region41
    $region40: #{tpu_custom_call.1} parent=1 // pred_region
      %186 = dma.done [#allocation6], 128
    $region41: #{tpu_custom_call.1} parent=1 // pred_fallthru
      _
    // Predicated region
    $region42: #{tpu_custom_call.1} parent=1 // pred_check
      _
    $region43: #{tpu_custom_call.1} parent=1 // pred_check_branch
      %188 = sbr.rel (0) target = $region45
    $region44: #{tpu_custom_call.1} parent=1 // pred_region
      _
    $region45: #{tpu_custom_call.1} parent=1 // pred_fallthru
      _
    %189 = vsyncpa [#allocation5], 1
    %190 = vsyncpa [#allocation8], 1
    %191 = vsyncpa [#allocation6], 1

</llo_original>
